<compile_context>
chip_gen: v6e
topology: v6e:2x2x1
jax: 0.10.0
libtpu: 0.0.40
codegen_flags: <defaults>
</compile_context>

<pallas_src>
import functools

import jax
import jax.numpy as jnp
from jax import lax
from jax.experimental import pallas as pl
from jax.experimental.pallas import tpu as pltpu

_MIB = 1024 * 1024


def _tpu_params():
    """Best-effort per-chip parameters: (VMEM bytes, TensorCores per chip)."""
    vmem_bytes = 128 * _MIB
    num_cores = 1
    try:
        info = pltpu.get_tpu_info()
        v = getattr(info, "vmem_capacity_bytes", None)
        if v:
            vmem_bytes = int(v)
        for name in ("num_cores", "num_tensorcores", "tensorcore_count",
                     "cores_per_chip", "num_tensor_cores"):
            c = getattr(info, name, None)
            if c:
                num_cores = int(c)
                break
    except Exception:  # defensive: fall back to safe single-core defaults
        pass
    return vmem_bytes, num_cores


def _tile_colsum(x_ref, base, n_rows, masked):
    """f32 column sum of the current (tb, L) tile, optionally row-masked."""
    x = x_ref[...].astype(jnp.float32)
    if masked:
        row = base + lax.broadcasted_iota(jnp.int32, x.shape, 0)
        x = jnp.where(row < n_rows, x, 0.0)
    return jnp.sum(x, axis=0, keepdims=True)


def _entropy_from_colsum(colsum, *, n_classes, batch, lanes):
    """sum(softmax(m) * log_softmax(m)) for m = colsum / batch.  colsum: (1, lanes)."""
    acc = colsum
    width = lanes
    # Fold the lanes//n_classes interleaved segments (lane-packed path only;
    # loop is empty when lanes == n_classes; 128/C is always a power of two).
    while width > n_classes:
        width //= 2
        acc = acc + pltpu.roll(acc, shift=width, axis=1)

    lane = lax.broadcasted_iota(jnp.int32, acc.shape, 1)
    valid = lane < n_classes

    m = acc * (1.0 / batch)                                       # true mean
    mx = jnp.max(jnp.where(valid, m, -jnp.inf), keepdims=True)    # (1, 1)
    z = jnp.where(valid, m - mx, 0.0)
    e = jnp.where(valid, jnp.exp(z), 0.0)
    s = jnp.sum(e, keepdims=True)                                 # (1, 1)
    ez = jnp.sum(e * z, keepdims=True)                            # (1, 1)
    # sum(p * log p) = sum(e*z)/s - log(s)
    return ez * pl.reciprocal(s, approx=False) - jnp.log(s)


def _colsum_fused_kernel(x_ref, o_ref, acc_ref, *, tb, n_rows, need_mask,
                         n_classes, batch, lanes):
    """Single-split pass: stream tiles, accumulate, finalize to a (1,1) scalar."""
    i = pl.program_id(0)

    @pl.when(i == 0)
    def _():
        acc_ref[...] = jnp.zeros_like(acc_ref)

    base = i * tb
    if not need_mask:
        acc_ref[...] += _tile_colsum(x_ref, base, n_rows, False)
    else:
        is_full = base + tb <= n_rows

        @pl.when(is_full)
        def _():
            acc_ref[...] += _tile_colsum(x_ref, base, n_rows, False)

        @pl.when(jnp.logical_not(is_full))
        def _():
            acc_ref[...] += _tile_colsum(x_ref, base, n_rows, True)

    @pl.when(i == pl.num_programs(0) - 1)
    def _():
        o_ref[...] = _entropy_from_colsum(
            acc_ref[...], n_classes=n_classes, batch=batch, lanes=lanes)


def _colsum_split_kernel(x_ref, ps_ref, *, tb, n_rows, bps, need_mask):
    """Two-split pass: each split accumulates directly into its (1,1,L) output."""
    p = pl.program_id(0)   # split index (one per TensorCore where available)
    i = pl.program_id(1)   # row-block within the split (reduction axis)

    @pl.when(i == 0)
    def _():
        ps_ref[...] = jnp.zeros_like(ps_ref)

    base = (p * bps + i) * tb
    if not need_mask:
        ps_ref[0] += _tile_colsum(x_ref, base, n_rows, False)
    else:
        is_full = base + tb <= n_rows

        @pl.when(is_full)
        def _():
            ps_ref[0] += _tile_colsum(x_ref, base, n_rows, False)

        @pl.when(jnp.logical_not(is_full))
        def _():
            # Covers both the padded last block and any clamped/redundant block
            # (whose rows are all >= n_rows and therefore contribute zero).
            ps_ref[0] += _tile_colsum(x_ref, base, n_rows, True)


def _finalize_kernel(ps_ref, o_ref, *, n_classes, batch, lanes):
    """Combine split partials -> mean -> sum(softmax * log_softmax) (scalar)."""
    colsum = jnp.sum(ps_ref[...].astype(jnp.float32), axis=0)     # (1, lanes)
    o_ref[...] = _entropy_from_colsum(
        colsum, n_classes=n_classes, batch=batch, lanes=lanes)


@functools.partial(jax.jit, static_argnames=("block_budget_bytes", "force_nsplit"))
def beloss(logits: jax.Array, *, block_budget_bytes: int | None = None,
           force_nsplit: int | None = None):
    """Pallas implementation of BELoss.forward. Returns a scalar float32."""
    B, C = logits.shape

    # Lane packing for small class counts: (B, C) -> (B*C//128, 128) is a free
    # row-major reshape and makes every vector register lane-dense.
    if C < 128 and 128 % C == 0 and B % (128 // C) == 0:
        x = logits.reshape((B * C) // 128, 128)
    else:
        x = logits
    R, L = x.shape

    vmem_bytes, num_cores = _tpu_params()

    itemsize = jnp.dtype(x.dtype).itemsize
    sub = max(8, 32 // itemsize)                 # 8 f32, 16 bf16, 32 int8/fp8

    # Per-chip block budget: ~8 MiB default, capped so the 2x double-buffered
    # input stays comfortably inside the chip's VMEM (64 MiB/TC on v7x).
    budget = block_budget_bytes if block_budget_bytes is not None else 8 * _MIB
    budget = max(min(budget, vmem_bytes // 8), sub * L * itemsize)

    row_bytes = L * itemsize
    tb = max((budget // row_bytes) // sub * sub, sub)
    if tb >= R:
        tb = R                                   # single full block (exact dims)
    nb = pl.cdiv(R, tb)

    # Explicit VMEM limit so big tiles work on every generation (v5e scoped
    # default is only 16 MiB) without overshooting v7x's 64 MiB physical VMEM.
    in_block_bytes = tb * row_bytes
    vmem_limit = max(4 * in_block_bytes + 2 * _MIB, 16 * _MIB)
    vmem_limit = int(min(vmem_limit, vmem_bytes * 3 // 4))

    # 2-way TensorCore split only when the chip actually has 2 TCs (v7x);
    # single-TC chips (v5e/v6e) take the fused single-pass path.
    nsplit = force_nsplit if force_nsplit is not None else (2 if num_cores >= 2 else 1)
    if nb < 2:
        nsplit = 1

    if nsplit == 1:
        need_mask = nb * tb > R
        cost = pl.CostEstimate(flops=R * L, transcendentals=L,
                               bytes_accessed=R * L * itemsize)
        out = pl.pallas_call(
            functools.partial(_colsum_fused_kernel, tb=tb, n_rows=R,
                              need_mask=need_mask, n_classes=C, batch=B, lanes=L),
            out_shape=jax.ShapeDtypeStruct((1, 1), jnp.float32),
            grid_spec=pltpu.PrefetchScalarGridSpec(
                num_scalar_prefetch=0,
                grid=(nb,),
                in_specs=[pl.BlockSpec((tb, L), lambda i: (i, 0))],
                out_specs=pl.BlockSpec((1, 1), lambda i: (0, 0)),
                scratch_shapes=[pltpu.VMEM((1, L), jnp.float32)],
            ),
            compiler_params=pltpu.CompilerParams(
                dimension_semantics=("arbitrary",),
                vmem_limit_bytes=vmem_limit),
            cost_estimate=cost,
        )(x)
        return out[0, 0]

    # ---- split path (multi-TensorCore) ----
    bps = pl.cdiv(nb, nsplit)
    need_clamp = nsplit * bps > nb               # odd block count: keep the split
    need_mask = nsplit * bps * tb > R

    if need_clamp:
        in_map = lambda p, i: (jnp.minimum(p * bps + i, nb - 1), 0)
    else:
        in_map = lambda p, i: (p * bps + i, 0)

    split_sem = (getattr(pltpu, "CORE_PARALLEL", "parallel")
                 if num_cores >= 2 else "parallel")

    cost = pl.CostEstimate(flops=R * L, transcendentals=0,
                           bytes_accessed=R * L * itemsize)
    partials = pl.pallas_call(
        functools.partial(_colsum_split_kernel, tb=tb, n_rows=R, bps=bps,
                          need_mask=need_mask),
        out_shape=jax.ShapeDtypeStruct((nsplit, 1, L), jnp.float32),
        grid_spec=pltpu.PrefetchScalarGridSpec(
            num_scalar_prefetch=0,
            grid=(nsplit, bps),
            in_specs=[pl.BlockSpec((tb, L), in_map)],
            out_specs=pl.BlockSpec((1, 1, L), lambda p, i: (p, 0, 0)),
        ),
        compiler_params=pltpu.CompilerParams(
            dimension_semantics=(split_sem, "arbitrary"),
            vmem_limit_bytes=vmem_limit),
        cost_estimate=cost,
    )(x)

    out = pl.pallas_call(
        functools.partial(_finalize_kernel, n_classes=C, batch=B, lanes=L),
        out_shape=jax.ShapeDtypeStruct((1, 1), jnp.float32),
        in_specs=[pl.BlockSpec(memory_space=pltpu.MemorySpace.VMEM)],
        out_specs=pl.BlockSpec(memory_space=pltpu.MemorySpace.VMEM),
    )(partials)
    return out[0, 0]


def beloss_ref(logits: jax.Array) -> jax.Array:
    """Pure-JAX reference matching the PyTorch module."""
    m = jnp.mean(logits.astype(jnp.float32), axis=0)
    p = jax.nn.softmax(m, axis=0)
    logp = jax.nn.log_softmax(m, axis=0)
    entropy = -jnp.sum(p * logp)
    return -entropy


if __name__ == "__main__":
    key = jax.random.PRNGKey(0)

    # Primary (module-sized) check: batch=8, classes=32 (lane-packed, fused).
    B, C = 8, 32
    logits = jax.random.normal(key, (B, C), dtype=jnp.float32)
    out = beloss(logits)
    jax.block_until_ready(out)
    ref = beloss_ref(logits)
    assert jnp.allclose(out, ref, atol=1e-5, rtol=1e-5), (out, ref)

    # Generic (un-packed) path with several row tiles + padded-row masking.
    k1, k2 = jax.random.split(key)
    x2 = jax.random.normal(k1, (100, 100), dtype=jnp.float32)
    o2 = beloss(x2, block_budget_bytes=8192)
    jax.block_until_ready(o2)
    r2 = beloss_ref(x2)
    assert jnp.allclose(o2, r2, atol=1e-4, rtol=1e-5), (o2, r2)

    # Forced 2-way split: exercises clamped index_map, mask gating and the
    # finalize kernel even on single-TensorCore chips.
    o2s = beloss(x2, block_budget_bytes=8192, force_nsplit=2)
    jax.block_until_ready(o2s)
    assert jnp.allclose(o2s, r2, atol=1e-4, rtol=1e-5), (o2s, r2)

    # Native-bf16 input, lane-packed, dtype-aware (16-row) tiles, fused path.
    x3 = jax.random.normal(k2, (128, 32), dtype=jnp.bfloat16)
    o3 = beloss(x3, block_budget_bytes=4096)
    jax.block_until_ready(o3)
    r3 = beloss_ref(x3)
    assert jnp.allclose(o3, r3, atol=1e-4, rtol=1e-5), (o3, r3)

    print("KERNEL_OK")
</pallas_src>

<mosaic_0001>
module attributes {stable_mosaic.version = 11 : i64} {
  func.func @_colsum_fused_kernel(%arg0: i32, %arg1: memref<2x128xf32, #tpu.memory_space<vmem>>, %arg2: memref<1x1xf32, #tpu.memory_space<vmem>>, %arg3: memref<1x128xf32, #tpu.memory_space<vmem>>) attributes {dimension_semantics = [#tpu.dimension_semantics<arbitrary>], iteration_bounds = array<i64: 1>, scalar_prefetch = 0 : i64, scratch_operands = 1 : i64, tpu.core_type = #tpu.core_type<tc>, window_params = [{transform_indices = @transform_0, window_bounds = array<i64: 2, 128>}, {pipeline_mode = #tpu.pipeline_mode<synchronous>, transform_indices = @transform_1, window_bounds = array<i64: 1, 1>}]} {
    %c0_i32 = arith.constant 0 : i32
    %0 = arith.cmpi eq, %arg0, %c0_i32 : i32
    %1 = arith.extui %0 : i1 to i32
    %c0_i32_0 = arith.constant 0 : i32
    %2 = arith.cmpi ne, %1, %c0_i32_0 : i32
    scf.if %2 {
      %cst_8 = arith.constant 0.000000e+00 : f32
      %12 = vector.broadcast %cst_8 : f32 to vector<1x128xf32>
      %c0_9 = arith.constant 0 : index
      %c0_10 = arith.constant 0 : index
      %13 = vector.load %arg3[%c0_9, %c0_10] : memref<1x128xf32, #tpu.memory_space<vmem>>, vector<1x128xf32>
      tpu.vector_store %arg3[%c0_9, %c0_10], %12 {strides = array<i32>} : memref<1x128xf32, #tpu.memory_space<vmem>>, vector<1x128xf32>,
    } else {
    }
    %c0 = arith.constant 0 : index
    %c0_1 = arith.constant 0 : index
    %3 = vector.load %arg3[%c0, %c0_1] : memref<1x128xf32, #tpu.memory_space<vmem>>, vector<1x128xf32>
    %c0_2 = arith.constant 0 : index
    %c0_3 = arith.constant 0 : index
    %4 = vector.load %arg1[%c0_2, %c0_3] : memref<2x128xf32, #tpu.memory_space<vmem>>, vector<2x128xf32>
    %cst = arith.constant dense<0.000000e+00> : vector<128xf32>
    %5 = vector.multi_reduction <add>, %4, %cst [0] : vector<2x128xf32> to vector<128xf32>
    %6 = vector.shape_cast %5 : vector<128xf32> to vector<1x128xf32>
    %7 = arith.addf %3, %6 : vector<1x128xf32>
    %c0_4 = arith.constant 0 : index
    %c0_5 = arith.constant 0 : index
    %8 = vector.load %arg3[%c0_4, %c0_5] : memref<1x128xf32, #tpu.memory_space<vmem>>, vector<1x128xf32>
    tpu.vector_store %arg3[%c0_4, %c0_5], %7 {strides = array<i32>} : memref<1x128xf32, #tpu.memory_space<vmem>>, vector<1x128xf32>,
    %c0_i32_6 = arith.constant 0 : i32
    %9 = arith.cmpi eq, %arg0, %c0_i32_6 : i32
    %10 = arith.extui %9 : i1 to i32
    %c0_i32_7 = arith.constant 0 : i32
    %11 = arith.cmpi ne, %10, %c0_i32_7 : i32
    scf.if %11 {
      %c0_8 = arith.constant 0 : index
      %c0_9 = arith.constant 0 : index
      %12 = vector.load %arg3[%c0_8, %c0_9] : memref<1x128xf32, #tpu.memory_space<vmem>>, vector<1x128xf32>
      %c64_i32 = arith.constant 64 : i32
      %13 = tpu.dynamic_rotate %12 by %c64_i32 dim 1 : vector<1x128xf32>, i32 -> vector<1x128xf32>
      %14 = arith.addf %12, %13 : vector<1x128xf32>
      %c32_i32 = arith.constant 32 : i32
      %15 = tpu.dynamic_rotate %14 by %c32_i32 dim 1 : vector<1x128xf32>, i32 -> vector<1x128xf32>
      %16 = arith.addf %14, %15 : vector<1x128xf32>
      %17 = tpu.iota {dimensions = array<i32: 1>} : vector<1x128xi32>
      %c32_i32_10 = arith.constant 32 : i32
      %18 = vector.broadcast %c32_i32_10 : i32 to vector<1x128xi32>
      %19 = arith.cmpi slt, %17, %18 : vector<1x128xi32>
      %cst_11 = arith.constant 1.250000e-01 : f32
      %20 = vector.broadcast %cst_11 : f32 to vector<1x128xf32>
      %21 = arith.mulf %16, %20 : vector<1x128xf32>
      %cst_12 = arith.constant 0xFF800000 : f32
      %22 = vector.broadcast %cst_12 : f32 to vector<1x128xf32>
      %23 = arith.select %19, %21, %22 : vector<1x128xi1>, vector<1x128xf32>
      %24 = vector.shape_cast %23 : vector<1x128xf32> to vector<1x1x128xf32>
      %cst_13 = arith.constant dense<0xFF800000> : vector<1xf32>
      %25 = vector.multi_reduction <maximumf>, %24, %cst_13 [1, 2] : vector<1x1x128xf32> to vector<1xf32>
      %26 = vector.shape_cast %25 : vector<1xf32> to vector<1x1x1xf32>
      %27 = vector.extract %26[0, 0, 0] : f32 from vector<1x1x1xf32>
      %28 = vector.broadcast %27 : f32 to vector<1x1xf32>
      %29 = vector.broadcast %28 : vector<1x1xf32> to vector<1x128xf32>
      %30 = arith.subf %21, %29 : vector<1x128xf32>
      %cst_14 = arith.constant 0.000000e+00 : f32
      %31 = vector.broadcast %cst_14 : f32 to vector<1x128xf32>
      %32 = arith.select %19, %30, %31 : vector<1x128xi1>, vector<1x128xf32>
      %33 = math.exp %32 : vector<1x128xf32>
      %cst_15 = arith.constant 0.000000e+00 : f32
      %34 = vector.broadcast %cst_15 : f32 to vector<1x128xf32>
      %35 = arith.select %19, %33, %34 : vector<1x128xi1>, vector<1x128xf32>
      %36 = vector.shape_cast %35 : vector<1x128xf32> to vector<1x1x128xf32>
      %cst_16 = arith.constant dense<0.000000e+00> : vector<1xf32>
      %37 = vector.multi_reduction <add>, %36, %cst_16 [1, 2] : vector<1x1x128xf32> to vector<1xf32>
      %38 = vector.shape_cast %37 : vector<1xf32> to vector<1x1x1xf32>
      %39 = vector.extract %38[0, 0, 0] : f32 from vector<1x1x1xf32>
      %40 = vector.broadcast %39 : f32 to vector<1x1xf32>
      %41 = arith.mulf %35, %32 : vector<1x128xf32>
      %42 = vector.shape_cast %41 : vector<1x128xf32> to vector<1x1x128xf32>
      %cst_17 = arith.constant dense<0.000000e+00> : vector<1xf32>
      %43 = vector.multi_reduction <add>, %42, %cst_17 [1, 2] : vector<1x1x128xf32> to vector<1xf32>
      %44 = vector.shape_cast %43 : vector<1xf32> to vector<1x1x1xf32>
      %45 = vector.extract %44[0, 0, 0] : f32 from vector<1x1x1xf32>
      %46 = vector.broadcast %45 : f32 to vector<1x1xf32>
      %47 = tpu.reciprocal %40 : vector<1x1xf32> -> vector<1x1xf32>
      %48 = arith.mulf %46, %47 : vector<1x1xf32>
      %49 = math.log %40 : vector<1x1xf32>
      %50 = arith.subf %48, %49 : vector<1x1xf32>
      %c0_18 = arith.constant 0 : index
      %c0_19 = arith.constant 0 : index
      %51 = vector.load %arg2[%c0_18, %c0_19] : memref<1x1xf32, #tpu.memory_space<vmem>>, vector<1x1xf32>
      tpu.vector_store %arg2[%c0_18, %c0_19], %50 {strides = array<i32>} : memref<1x1xf32, #tpu.memory_space<vmem>>, vector<1x1xf32>,
    } else {
    }
    return
  }
  func.func @transform_0(%arg0: i32) -> (i32, i32) {
    %c0_i32 = arith.constant 0 : i32
    %c0_i32_0 = arith.constant 0 : i32
    return %arg0, %c0_i32 : i32, i32
  }
  func.func @transform_1(%arg0: i32) -> (i32, i32) {
    %c0_i32 = arith.constant 0 : i32
    %c0_i32_0 = arith.constant 0 : i32
    %c0_i32_1 = arith.constant 0 : i32
    return %c0_i32, %c0_i32_0 : i32, i32
  }
}

</mosaic_0001>

<llo_original>
// kernel: beloss.1
$region0: #{beloss.1}
  #allocation0 [shape = 'u32[]', space=smem, size = 0x4, offset = 0x4, fixed_abs, tag = 'smem constant byte address 0x4 - core index']
  #allocation1 [shape = 'u32[144,128]{1,0:T(1,128)}', space=vmem, size = 0x12000, scoped, tag = 'internal scratch']
  #allocation2 [shape = 'f32[1,128]{1,0:T(1,128)}', space=vmem, size = 0x200, scoped, tag = 'scratch operand']
  %s0 = inlined_call_operand.vmem [shape: f32[2,128], index: 0, kind: input, shape index: {}]
  %s1 = inlined_call_operand.hbm [shape: f32[1,1], index: 1, kind: output, shape index: {}]
  %s2 = sld [smem:[#allocation0]]
  $region22: #{beloss.1} parent=0
    _
  %s4 = ssub.s32 1, %s2
  %s5 = scalar_select 0, %s4, %s2
  $region1: #{beloss.1} parent=0
    #allocation3 [shape = 'u8[512]{0}', space=vmem, size = 0x400, scoped, tag = 'output window, operand 0, single buffered']
    #allocation4 [shape = 's32[1]{0}', space=sflag, size = 0x4, scoped, tag = 'scoped memory for beloss.1']
    %6 = vsyncpa [#allocation4], 0
    // Predicated region
    $region2: #{beloss.1} parent=1 // pred_check
      _
    $region3: #{beloss.1} parent=1 // pred_check_branch
      %8 = sbr.rel (0) target = $region5
    $region4: #{beloss.1} parent=1 // pred_region
      _
    $region5: #{beloss.1} parent=1 // pred_fallthru
      _
    %p9 = scmp.eq.s32.totalorder 0, 0
    // Predicated region
    $region6: #{beloss.1} parent=1 // pred_check
      %p10 = pneg %p9
    $region7: #{beloss.1} parent=1 // pred_check_branch
      %12 = sbr.rel (%p10) target = $region9
    $region8: #{beloss.1} parent=1 // pred_region
      %13 = vst [vmem:[#allocation2] sm:$0x1] 0.0
    $region9: #{beloss.1} parent=1 // pred_fallthru
      _
    %v14 = vld [vmem:[#allocation2] sm:$0x1]
    %v15 = vld [vmem:[%s0] sm:$0x3]
    %vm16 = vcmask 1041408
    %v17 = vsel %vm16, %v15, 0.0
    %v18 = vrot.slane %v17, 4
    %v19 = vadd.f32 %v17, %v18
    %v20 = vrot.slane %v19, 2
    %v21 = vadd.f32 %v19, %v20
    %v22 = vrot.slane %v21, 1
    %v23 = vadd.f32 %v21, %v22
    %v24 = vadd.f32 %v14, %v23
    %25 = vst [vmem:[#allocation2] sm:$0x1] %v24
    // Predicated region
    $region10: #{beloss.1} parent=1 // pred_check
      %p26 = pneg %p9
    $region11: #{beloss.1} parent=1 // pred_check_branch
      %28 = sbr.rel (%p26) target = $region13
    $region12: #{beloss.1} parent=1 // pred_region
      %v29 = vld [vmem:[#allocation2] sm:$0x1]
      %30 = vrot.lane.b32.xlu0 %v29, 64
      %v31 = vpop.permute.xlu0 %30
      %v32 = vadd.f32 %v29, %v31
      %33 = vrot.lane.b32.xlu0 %v32, 32
      %v34 = vpop.permute.xlu0 %33
      %v35 = vadd.f32 %v32, %v34
      %v36 = vlaneseq
      %v37 = vand.u32 %v36, 127
      %vm38 = vcmp.lt.s32.totalorder %v37, 32
      %v39 = vmul.f32 %v35, 0.125
      %v40 = vsel %vm38, %v39, -inf
      %vm41 = vcmask 1040384
      %v42 = vsel %vm41, %v40, -inf
      %43 = vmax.xlane.f32.xlu0 %v42
      %v44 = vpop.xlane.xlu0 %43
      %v45 = vrot.slane %v44, 4
      %v46 = vmax.f32 %v44, %v45
      %v47 = vrot.slane %v46, 2
      %v48 = vmax.f32 %v46, %v47
      %v49 = vrot.slane %v48, 1
      %v50 = vmax.f32 %v48, %v49
      %s51 = vtos %v50
      %v52 = vstv %s51
      %v53 = vsub.f32 %v39, %v52
      %v54 = vsel %vm38, %v53, 0.0
      %v55 = vmul.f32 %v54, 1.442695
      %v56 = vpow.pop %v55
      %v57 = vsel %vm38, %v56, 0.0
      %v58 = vsel %vm41, %v57, 0.0
      %59 = vadd.xlane.f32.xlu0 %v58
      %v60 = vpop.xlane.xlu0 %59
      %v61 = vrot.slane %v60, 4
      %v62 = vadd.f32 %v60, %v61
      %v63 = vrot.slane %v62, 2
      %v64 = vadd.f32 %v62, %v63
      %v65 = vrot.slane %v64, 1
      %v66 = vadd.f32 %v64, %v65
      %s67 = vtos %v66
      %v68 = vstv %s67
      %v69 = vmul.f32 %v57, %v54
      %v70 = vsel %vm41, %v69, 0.0
      %71 = vadd.xlane.f32.xlu0 %v70
      %v72 = vpop.xlane.xlu0 %71
      %v73 = vrot.slane %v72, 4
      %v74 = vadd.f32 %v72, %v73
      %v75 = vrot.slane %v74, 2
      %v76 = vadd.f32 %v74, %v75
      %v77 = vrot.slane %v76, 1
      %v78 = vadd.f32 %v76, %v77
      %s79 = vtos %v78
      %v80 = vstv %s79
      %v81 = vrcp.pop %v68
      %v82 = vmul.f32 %v80, %v81
      %v83 = vlog2.pop %v68
      %v84 = vmul.f32 %v83, 0.6931472
      %v85 = vsub.f32 %v82, %v84
      %vm86 = vcmask 0
      %87 = vst.msk [vmem:[#allocation3] sm:$0x1] %vm86, %v85
    $region13: #{beloss.1} parent=1 // pred_fallthru
      _
    // Predicated region
    $region14: #{beloss.1} parent=1 // pred_check
      _
    $region15: #{beloss.1} parent=1 // pred_check_branch
      %89 = sbr.rel (0) target = $region17
    $region16: #{beloss.1} parent=1 // pred_region
      %s91 = ssub.s32 16, 16
      %92 = vsyncadd [#allocation4], %s91
      %s94 = sshll.u32 [#allocation3], 4
      %s95 = int_to_ptr.vmem [resolvable:$true] %s94
      %97 = dma.vmem_to_hbm [thread:$0]  %s95, 16, %s1, [#allocation4]
    $region17: #{beloss.1} parent=1 // pred_fallthru
      _
    // Predicated region
    $region18: #{beloss.1} parent=1 // pred_check
      _
    $region19: #{beloss.1} parent=1 // pred_check_branch
      %99 = sbr.rel (0) target = $region21
    $region20: #{beloss.1} parent=1 // pred_region
      %100 = dma.done [#allocation4], 16
    $region21: #{beloss.1} parent=1 // pred_fallthru
      _
    %101 = vsyncpa [#allocation4], 1

</llo_original>
